<compile_context>
chip_gen: v7x
topology: tpu7x:2x2x1
jax: 0.10.0
libtpu: 0.0.40
codegen_flags: <defaults>
</compile_context>

<pallas_src>
import jax
import jax.numpy as jnp
from jax.experimental import pallas as pl
from jax.experimental.pallas import tpu as pltpu

LANES = 128
TARGET_BLOCK_BYTES = 4 * 1024 * 1024   # ~4 MiB per VMEM buffer
SINGLE_BLOCK_BYTES = 512 * 1024        # below this: whole array as one block, no grid
GRID_VMEM_LIMIT = 32 * 1024 * 1024     # 4 buffers x 4 MiB = 16 MiB, headroom included


def _sub_kernel(c_ref, x_ref, o_ref):
    # c lives in SMEM as f32; cast explicitly to the compute dtype so low-precision
    # inputs don't get silently promoted by weak typing.
    c = c_ref[0].astype(x_ref.dtype)
    o_ref[...] = x_ref[...] - c


def _round_up(n: int, m: int) -> int:
    return ((n + m - 1) // m) * m


@jax.jit
def sub_scale(x: jax.Array, scale, alpha=1.0) -> jax.Array:
    """Pallas TPU implementation of torch.Tensor.sub(scale, alpha): y = x - alpha*scale."""
    dtype = x.dtype
    orig_shape = x.shape
    total = x.size
    itemsize = jnp.dtype(dtype).itemsize

    # Runtime scalar (no recompilation when scale/alpha change).
    c = (jnp.asarray(alpha, jnp.float32) * jnp.asarray(scale, jnp.float32)).reshape(1)

    # Full 32-bit-packed vreg granularity: 8 rows f32, 16 rows bf16, 32 rows int8/fp8.
    sub_mult = max(8, 32 // itemsize)

    # Flatten to a lane-dense (rows, 128) slab; padding only for non-128-multiple sizes.
    x_flat = x.reshape(-1)
    pad = (-total) % LANES
    if pad:
        # TODO(synk): ragged (non multiple-of-128) totals pay one extra pad/slice HBM
        # pass; the NCHW shapes this module is tested with never hit this branch.
        x_flat = jnp.pad(x_flat, (0, pad))
    rows = x_flat.size // LANES
    x2d = x_flat.reshape(rows, LANES)

    smem_spec = pl.BlockSpec(memory_space=pltpu.MemorySpace.SMEM)

    if rows * LANES * itemsize <= SINGLE_BLOCK_BYTES:
        # Tiny inputs (the 8 KiB test tensor): single block, no grid, no per-step overhead.
        out2d = pl.pallas_call(
            _sub_kernel,
            out_shape=jax.ShapeDtypeStruct((rows, LANES), dtype),
            in_specs=[smem_spec, pl.BlockSpec(memory_space=pltpu.MemorySpace.VMEM)],
            out_specs=pl.BlockSpec(memory_space=pltpu.MemorySpace.VMEM),
        )(c, x2d)
    else:
        # Large fixed blocks + cdiv grid; Pallas masks the ragged final block.
        max_block_rows = max(sub_mult, (TARGET_BLOCK_BYTES // itemsize) // LANES)
        # Ensure >= 2 grid steps for mid-size inputs (both v7x TCs get work, DMA overlaps).
        half_rows = _round_up(pl.cdiv(rows, 2), sub_mult)
        block_rows = min(max_block_rows, half_rows)
        grid = (pl.cdiv(rows, block_rows),)
        out2d = pl.pallas_call(
            _sub_kernel,
            out_shape=jax.ShapeDtypeStruct((rows, LANES), dtype),
            grid=grid,
            in_specs=[smem_spec, pl.BlockSpec((block_rows, LANES), lambda i: (i, 0))],
            out_specs=pl.BlockSpec((block_rows, LANES), lambda i: (i, 0)),
            compiler_params=pltpu.CompilerParams(
                dimension_semantics=("parallel",),
                vmem_limit_bytes=GRID_VMEM_LIMIT,
            ),
        )(c, x2d)

    out_flat = out2d.reshape(-1)
    if pad:
        out_flat = out_flat[:total]
    return out_flat.reshape(orig_shape)


if __name__ == "__main__":
    key = jax.random.PRNGKey(0)

    # Small NCHW input, consistent with the PyTorch test module.
    x = jax.random.normal(key, (2, 4, 16, 16), dtype=jnp.float32)
    scale = 2.5
    alpha = 1.0

    y = sub_scale(x, scale, alpha)
    jax.block_until_ready(y)

    ref = x - alpha * scale
    assert y.shape == x.shape and y.dtype == x.dtype
    assert jnp.allclose(y, ref, atol=1e-6), "mismatch vs reference (small path)"

    # Exercise the gridded (multi-block, parallel) path with a modest 2 MiB input.
    x_big = jax.random.normal(jax.random.PRNGKey(1), (8, 64, 32, 32), dtype=jnp.float32)
    y_big = sub_scale(x_big, 0.75, 2.0)
    jax.block_until_ready(y_big)
    assert jnp.allclose(y_big, x_big - 2.0 * 0.75, atol=1e-6), "mismatch vs reference (grid path)"

    print("KERNEL_OK")
</pallas_src>

<mosaic_0001>
module attributes {stable_mosaic.version = 11 : i64} {
  func.func @_sub_kernel(%arg0: memref<1xf32, #tpu.memory_space<smem>>, %arg1: memref<16x128xf32, #tpu.memory_space<vmem>>, %arg2: memref<16x128xf32, #tpu.memory_space<vmem>>) attributes {dimension_semantics = [], scalar_prefetch = 0 : i64, scratch_operands = 0 : i64, tpu.core_type = #tpu.core_type<tc>} {
    %c0 = arith.constant 0 : index
    %0 = memref.load %arg0[%c0] : memref<1xf32, #tpu.memory_space<smem>>
    %c0_0 = arith.constant 0 : index
    %c0_1 = arith.constant 0 : index
    %1 = vector.load %arg1[%c0_0, %c0_1] : memref<16x128xf32, #tpu.memory_space<vmem>>, vector<16x128xf32>
    %2 = vector.broadcast %0 : f32 to vector<16x128xf32>
    %3 = arith.subf %1, %2 : vector<16x128xf32>
    %c0_2 = arith.constant 0 : index
    %c0_3 = arith.constant 0 : index
    %4 = vector.load %arg2[%c0_2, %c0_3] : memref<16x128xf32, #tpu.memory_space<vmem>>, vector<16x128xf32>
    tpu.vector_store %arg2[%c0_2, %c0_3], %3 {strides = array<i32>} : memref<16x128xf32, #tpu.memory_space<vmem>>, vector<16x128xf32>,
    return
  }
}

</mosaic_0001>

<llo_original>
// kernel: sub_scale.1
$region0: #{sub_scale.1}
  #allocation0 [shape = 'u32[]', space=smem, size = 0x4, offset = 0x4, fixed_abs, tag = 'smem constant byte address 0x4 - core index']
  #allocation1 [shape = 'u32[144,128]{1,0:T(1,128)}', space=vmem, size = 0x12000, scoped, tag = 'internal scratch']
  #allocation2 [shape = 'f32[1]{0:T(128)S(6)}', space=smem, size = 0x200, scoped, tag = 'scoped memory for sub_scale.1']
  %s0 = inlined_call_operand.<no memory space> [shape: f32[1], index: 0, kind: input, shape index: {}]
  %s1 = inlined_call_operand.vmem [shape: f32[16,128], index: 1, kind: input, shape index: {}]
  %s2 = inlined_call_operand.vmem [shape: f32[16,128], index: 2, kind: output, shape index: {}]
  %s3 = sld [smem:[#allocation0]]
  $region18: #{sub_scale.1} parent=0
    _
  %s5 = ssub.s32 1, %s3
  %s6 = scalar_select 0, %s5, %s3
  %7 = sst [smem:[#allocation2]] %s0
  // Predicated region
  $region2: #{sub_scale.1} parent=0 // pred_check
    _
  $region3: #{sub_scale.1} parent=0 // pred_check_branch
    %9 = sbr.rel (0) target = $region5
  $region4: #{sub_scale.1} parent=0 // pred_region
    _
  $region5: #{sub_scale.1} parent=0 // pred_fallthru
    _
  // Predicated region
  $region6: #{sub_scale.1} parent=0 // pred_check
    _
  $region7: #{sub_scale.1} parent=0 // pred_check_branch
    %11 = sbr.rel (0) target = $region9
  $region8: #{sub_scale.1} parent=0 // pred_region
    _
  $region9: #{sub_scale.1} parent=0 // pred_fallthru
    _
  %s12 = sld [smem:[#allocation2]]
  %v13 = vld [vmem:[%s1] sm:$0xff]
  %v14 = vld [vmem:[%s1 + $0x8] sm:$0xff]
  %v15 = vstv %s12
  %v16 = vsub.f32 %v13, %v15
  %v17 = vsub.f32 %v14, %v15
  %18 = vst [vmem:[%s2] sm:$0xff] %v16
  %19 = vst [vmem:[%s2 + $0x8] sm:$0xff] %v17
  // Predicated region
  $region10: #{sub_scale.1} parent=0 // pred_check
    _
  $region11: #{sub_scale.1} parent=0 // pred_check_branch
    %21 = sbr.rel (0) target = $region13
  $region12: #{sub_scale.1} parent=0 // pred_region
    _
  $region13: #{sub_scale.1} parent=0 // pred_fallthru
    _
  // Predicated region
  $region14: #{sub_scale.1} parent=0 // pred_check
    _
  $region15: #{sub_scale.1} parent=0 // pred_check_branch
    %23 = sbr.rel (0) target = $region17
  $region16: #{sub_scale.1} parent=0 // pred_region
    _
  $region17: #{sub_scale.1} parent=0 // pred_fallthru
    _

</llo_original>
